<compile_context>
chip_gen: v7x
topology: tpu7x:2x2x1
jax: 0.10.0
libtpu: 0.0.40
codegen_flags: <defaults>
</compile_context>

<pallas_src>
import jax
import jax.numpy as jnp
import numpy as np
from jax.experimental import pallas as pl
from jax.experimental.pallas import tpu as pltpu

_LANE = 128
_SUBLANE = 8
_BLOCK_ROWS = 4096          # 4096 * 128 * 4 B = 2 MiB per f32 input tile
_PAD_LOGIT = -50.0          # softplus(50) == 50 exactly in f32 -> masked elements add 0
_EPS = 1e-10
_VMEM_LIMIT = 32 * 1024 * 1024


def _round_up(v, m):
    return ((v + m - 1) // m) * m


def _num_tensorcores():
    """2 on multi-TensorCore chips (v4 / v5p / v7x), else 1 (v5e / v6e)."""
    try:
        kind = jax.devices()[0].device_kind.lower()
    except Exception:
        return 1
    return 2 if any(tag in kind for tag in ("v4", "v5p", "v7")) else 1


def _choose_bm(rows, nc):
    """Largest block-rows <= _BLOCK_ROWS keeping >= ~4 pipeline steps per core."""
    bm = max(_SUBLANE, (min(_BLOCK_ROWS, rows) // _SUBLANE) * _SUBLANE)
    target_tiles = 4 * nc
    while bm > _SUBLANE and -(-rows // bm) < target_tiles:
        nxt = max(_SUBLANE, ((bm // 2) // _SUBLANE) * _SUBLANE)
        if nxt == bm:
            break
        bm = nxt
    return bm


def _partial_terms(x, y):
    """Per-element balanced-BCE building blocks in f32: (gt, base, pos_extra)."""
    # Numerically stable softplus(-x) = max(-x, 0) + log1p(exp(-|x|))   (EUP exp/log)
    sp_neg = jnp.maximum(-x, 0.0) + jnp.log1p(jnp.exp(-jnp.abs(x)))
    base = (1.0 - y) * x + sp_neg          # ratio-independent part of BCEWithLogits
    pos_extra = y * sp_neg                 # part multiplied by (ratio - 1)
    return y, base, pos_extra


def _make_bbce_kernel(bm, tiles_per_core, rows_valid, need_mask):
    def kernel(pred_ref, gt_ref, acc_ref):
        t = pl.program_id(1)

        @pl.when(t == 0)
        def _init():
            acc_ref[...] = jnp.zeros_like(acc_ref)

        x = pred_ref[...].astype(jnp.float32)
        y = gt_ref[...].astype(jnp.float32)

        if need_mask:
            # Boundary / rounded-up tiles: the OOB part of the block is stale VMEM
            # (possibly NaN bit patterns) -> mask by logical row index BEFORE the
            # transcendental math.  pred->-50, gt->0 contributes exactly 0 everywhere.
            row0 = (pl.program_id(0) * tiles_per_core + t) * bm
            ridx = row0 + jax.lax.broadcasted_iota(jnp.int32, (bm, _LANE), 0)
            valid = ridx < rows_valid
            x = jnp.where(valid, x, _PAD_LOGIT)
            y = jnp.where(valid, y, 0.0)

        y_t, base, pos_extra = _partial_terms(x, y)

        # Sublane-axis partial reduce only (VPU); cross-lane (XLU) reduce deferred to
        # the O(1) wrapper epilogue.  Accumulator block stays resident across t.
        acc_ref[0:1, :] += jnp.sum(y_t, axis=0, keepdims=True)
        acc_ref[1:2, :] += jnp.sum(base, axis=0, keepdims=True)
        acc_ref[2:3, :] += jnp.sum(pos_extra, axis=0, keepdims=True)

    return kernel


@jax.jit
def bbce_with_logit_loss(pred, gt):
    """Balanced BCEWithLogitLoss forward.  pred/gt: any identical shape (e.g. NCHW)."""
    assert pred.shape == gt.shape
    n = int(np.prod(pred.shape))

    pred_flat = pred.reshape(-1)
    gt_flat = gt.reshape(-1)

    # Bulk: zero-copy reshape of the leading multiple-of-(8*128) elements to (rows, 128).
    rows = (n // (_SUBLANE * _LANE)) * _SUBLANE
    n_main = rows * _LANE

    s_gt = jnp.float32(0.0)
    s_base = jnp.float32(0.0)
    s_pos = jnp.float32(0.0)

    if rows > 0:
        nc_dev = _num_tensorcores()
        bm = _choose_bm(rows, nc_dev)
        num_valid_tiles = -(-rows // bm)
        nc = nc_dev if num_valid_tiles >= 2 * nc_dev else 1
        num_tiles = _round_up(num_valid_tiles, nc)
        tiles_per_core = num_tiles // nc
        need_mask = (num_tiles * bm != rows)

        if num_tiles == num_valid_tiles:
            in_map = lambda c, t: (c * tiles_per_core + t, 0)
        else:
            # Round-up tiles re-read the last valid block (never a fully-OOB DMA); the
            # in-kernel logical-index mask zeroes their contribution exactly.
            last = num_valid_tiles - 1
            in_map = lambda c, t: (jnp.minimum(c * tiles_per_core + t, last), 0)

        if n_main == n:
            x2 = pred_flat.reshape(rows, _LANE)
            y2 = gt_flat.reshape(rows, _LANE)
        else:
            x2 = pred_flat[:n_main].reshape(rows, _LANE)
            y2 = gt_flat[:n_main].reshape(rows, _LANE)

        acc = pl.pallas_call(
            _make_bbce_kernel(bm, tiles_per_core, rows, need_mask),
            out_shape=jax.ShapeDtypeStruct((nc, 3, _LANE), jnp.float32),
            grid=(nc, tiles_per_core),
            in_specs=[
                pl.BlockSpec((bm, _LANE), in_map),
                pl.BlockSpec((bm, _LANE), in_map),
            ],
            out_specs=pl.BlockSpec((None, 3, _LANE), lambda c, t: (c, 0, 0)),
            compiler_params=pltpu.CompilerParams(
                dimension_semantics=("parallel", "arbitrary"),
                vmem_limit_bytes=_VMEM_LIMIT,
            ),
        )(x2, y2)

        sums = jnp.sum(acc, axis=(0, 2))     # single fused cross-core / cross-lane reduce
        s_gt, s_base, s_pos = sums[0], sums[1], sums[2]

    if n_main != n:
        # O(1) tail: remaining (< 1024) elements in plain JAX, avoiding any full-array pad.
        tx = pred_flat[n_main:].astype(jnp.float32)
        ty = gt_flat[n_main:].astype(jnp.float32)
        ty_t, tbase, tpos = _partial_terms(tx, ty)
        s_gt = s_gt + jnp.sum(ty_t)
        s_base = s_base + jnp.sum(tbase)
        s_pos = s_pos + jnp.sum(tpos)

    # Balanced-BCE scalar epilogue.
    n_f = jnp.float32(n)
    count_pos = s_gt + _EPS
    count_neg = n_f - s_gt
    ratio = count_neg / count_pos
    w_neg = count_pos / (count_pos + count_neg)
    return w_neg * (s_base + (ratio - 1.0) * s_pos) / n_f


def _reference(pred, gt):
    """Pure-JAX reference mirroring the PyTorch module."""
    eps = 1e-10
    pred = pred.astype(jnp.float32)
    gt = gt.astype(jnp.float32)
    count_pos = jnp.sum(gt) + eps
    count_neg = jnp.sum(1.0 - gt)
    ratio = count_neg / count_pos
    w_neg = count_pos / (count_pos + count_neg)
    sp_neg = jnp.maximum(-pred, 0.0) + jnp.log1p(jnp.exp(-jnp.abs(pred)))
    per_elem = (1.0 - gt) * pred + (1.0 + (ratio - 1.0) * gt) * sp_neg
    return w_neg * jnp.mean(per_elem)


if __name__ == "__main__":
    key = jax.random.PRNGKey(0)
    k1, k2 = jax.random.split(key)

    # Small segmentation-style forward: NCHW logits + binary GT.
    pred = jax.random.normal(k1, (2, 4, 16, 16), dtype=jnp.float32)
    gt = (jax.random.uniform(k2, (2, 4, 16, 16)) > 0.7).astype(jnp.float32)

    loss = jax.block_until_ready(bbce_with_logit_loss(pred, gt))
    ref = jax.block_until_ready(_reference(pred, gt))
    np.testing.assert_allclose(np.asarray(loss), np.asarray(ref), rtol=1e-5, atol=1e-6)

    print("KERNEL_OK")
</pallas_src>

<mosaic_0001>
module attributes {stable_mosaic.version = 11 : i64} {
  func.func @kernel(%arg0: i32, %arg1: i32, %arg2: memref<8x128xf32, #tpu.memory_space<vmem>>, %arg3: memref<8x128xf32, #tpu.memory_space<vmem>>, %arg4: memref<1x3x128xf32, #tpu.memory_space<vmem>>) attributes {dimension_semantics = [#tpu.dimension_semantics<parallel>, #tpu.dimension_semantics<arbitrary>], iteration_bounds = array<i64: 1, 2>, scalar_prefetch = 0 : i64, scratch_operands = 0 : i64, tpu.core_type = #tpu.core_type<tc>, window_params = [{transform_indices = @transform_0, window_bounds = array<i64: 8, 128>}, {transform_indices = @transform_1, window_bounds = array<i64: 8, 128>}, {transform_indices = @transform_2, window_bounds = array<i64: 1, 3, 128>}]} {
    %c0_i32 = arith.constant 0 : i32
    %0 = arith.cmpi eq, %arg1, %c0_i32 : i32
    %1 = arith.extui %0 : i1 to i32
    %c0_i32_0 = arith.constant 0 : i32
    %2 = arith.cmpi ne, %1, %c0_i32_0 : i32
    scf.if %2 {
      %cst_26 = arith.constant 0.000000e+00 : f32
      %44 = vector.broadcast %cst_26 : f32 to vector<3x128xf32>
      %c0_27 = arith.constant 0 : index
      %c0_28 = arith.constant 0 : index
      %c0_29 = arith.constant 0 : index
      %45 = vector.load %arg4[%c0_27, %c0_28, %c0_29] : memref<1x3x128xf32, #tpu.memory_space<vmem>>, vector<1x3x128xf32>
      %46 = vector.shape_cast %45 : vector<1x3x128xf32> to vector<3x128xf32>
      %47 = vector.shape_cast %44 : vector<3x128xf32> to vector<1x3x128xf32>
      tpu.vector_store %arg4[%c0_27, %c0_28, %c0_29], %47 {strides = array<i32>} : memref<1x3x128xf32, #tpu.memory_space<vmem>>, vector<1x3x128xf32>,
    } else {
    }
    %c0 = arith.constant 0 : index
    %c0_1 = arith.constant 0 : index
    %3 = vector.load %arg2[%c0, %c0_1] : memref<8x128xf32, #tpu.memory_space<vmem>>, vector<8x128xf32>
    %c0_2 = arith.constant 0 : index
    %c0_3 = arith.constant 0 : index
    %4 = vector.load %arg3[%c0_2, %c0_3] : memref<8x128xf32, #tpu.memory_space<vmem>>, vector<8x128xf32>
    %cst = arith.constant 0.000000e+00 : f32
    %5 = vector.broadcast %cst : f32 to vector<8x128xf32>
    %6 = arith.subf %5, %3 : vector<8x128xf32>
    %cst_4 = arith.constant 0.000000e+00 : f32
    %7 = vector.broadcast %cst_4 : f32 to vector<8x128xf32>
    %8 = arith.maximumf %6, %7 : vector<8x128xf32>
    %9 = math.absf %3 : vector<8x128xf32>
    %cst_5 = arith.constant 0.000000e+00 : f32
    %10 = vector.broadcast %cst_5 : f32 to vector<8x128xf32>
    %11 = arith.subf %10, %9 : vector<8x128xf32>
    %12 = math.exp %11 : vector<8x128xf32>
    %13 = math.log1p %12 : vector<8x128xf32>
    %14 = arith.addf %8, %13 : vector<8x128xf32>
    %cst_6 = arith.constant 1.000000e+00 : f32
    %15 = vector.broadcast %cst_6 : f32 to vector<8x128xf32>
    %16 = arith.subf %15, %4 : vector<8x128xf32>
    %17 = arith.mulf %16, %3 : vector<8x128xf32>
    %18 = arith.addf %17, %14 : vector<8x128xf32>
    %19 = arith.mulf %4, %14 : vector<8x128xf32>
    %c0_7 = arith.constant 0 : index
    %c0_8 = arith.constant 0 : index
    %c0_9 = arith.constant 0 : index
    %20 = vector.load %arg4[%c0_7, %c0_8, %c0_9] : memref<1x3x128xf32, #tpu.memory_space<vmem>>, vector<1x1x128xf32>
    %21 = vector.shape_cast %20 : vector<1x1x128xf32> to vector<1x128xf32>
    %cst_10 = arith.constant dense<0.000000e+00> : vector<128xf32>
    %22 = vector.multi_reduction <add>, %4, %cst_10 [0] : vector<8x128xf32> to vector<128xf32>
    %23 = vector.shape_cast %22 : vector<128xf32> to vector<1x128xf32>
    %24 = arith.addf %21, %23 : vector<1x128xf32>
    %c0_11 = arith.constant 0 : index
    %c0_12 = arith.constant 0 : index
    %c0_13 = arith.constant 0 : index
    %25 = vector.load %arg4[%c0_11, %c0_12, %c0_13] : memref<1x3x128xf32, #tpu.memory_space<vmem>>, vector<1x1x128xf32>
    %26 = vector.shape_cast %25 : vector<1x1x128xf32> to vector<1x128xf32>
    %27 = vector.shape_cast %24 : vector<1x128xf32> to vector<1x1x128xf32>
    tpu.vector_store %arg4[%c0_11, %c0_12, %c0_13], %27 {strides = array<i32>} : memref<1x3x128xf32, #tpu.memory_space<vmem>>, vector<1x1x128xf32>,
    %c0_14 = arith.constant 0 : index
    %c1 = arith.constant 1 : index
    %c0_15 = arith.constant 0 : index
    %28 = vector.load %arg4[%c0_14, %c1, %c0_15] : memref<1x3x128xf32, #tpu.memory_space<vmem>>, vector<1x1x128xf32>
    %29 = vector.shape_cast %28 : vector<1x1x128xf32> to vector<1x128xf32>
    %cst_16 = arith.constant dense<0.000000e+00> : vector<128xf32>
    %30 = vector.multi_reduction <add>, %18, %cst_16 [0] : vector<8x128xf32> to vector<128xf32>
    %31 = vector.shape_cast %30 : vector<128xf32> to vector<1x128xf32>
    %32 = arith.addf %29, %31 : vector<1x128xf32>
    %c0_17 = arith.constant 0 : index
    %c1_18 = arith.constant 1 : index
    %c0_19 = arith.constant 0 : index
    %33 = vector.load %arg4[%c0_17, %c1_18, %c0_19] : memref<1x3x128xf32, #tpu.memory_space<vmem>>, vector<1x1x128xf32>
    %34 = vector.shape_cast %33 : vector<1x1x128xf32> to vector<1x128xf32>
    %35 = vector.shape_cast %32 : vector<1x128xf32> to vector<1x1x128xf32>
    tpu.vector_store %arg4[%c0_17, %c1_18, %c0_19], %35 {strides = array<i32>} : memref<1x3x128xf32, #tpu.memory_space<vmem>>, vector<1x1x128xf32>,
    %c0_20 = arith.constant 0 : index
    %c2 = arith.constant 2 : index
    %c0_21 = arith.constant 0 : index
    %36 = vector.load %arg4[%c0_20, %c2, %c0_21] : memref<1x3x128xf32, #tpu.memory_space<vmem>>, vector<1x1x128xf32>
    %37 = vector.shape_cast %36 : vector<1x1x128xf32> to vector<1x128xf32>
    %cst_22 = arith.constant dense<0.000000e+00> : vector<128xf32>
    %38 = vector.multi_reduction <add>, %19, %cst_22 [0] : vector<8x128xf32> to vector<128xf32>
    %39 = vector.shape_cast %38 : vector<128xf32> to vector<1x128xf32>
    %40 = arith.addf %37, %39 : vector<1x128xf32>
    %c0_23 = arith.constant 0 : index
    %c2_24 = arith.constant 2 : index
    %c0_25 = arith.constant 0 : index
    %41 = vector.load %arg4[%c0_23, %c2_24, %c0_25] : memref<1x3x128xf32, #tpu.memory_space<vmem>>, vector<1x1x128xf32>
    %42 = vector.shape_cast %41 : vector<1x1x128xf32> to vector<1x128xf32>
    %43 = vector.shape_cast %40 : vector<1x128xf32> to vector<1x1x128xf32>
    tpu.vector_store %arg4[%c0_23, %c2_24, %c0_25], %43 {strides = array<i32>} : memref<1x3x128xf32, #tpu.memory_space<vmem>>, vector<1x1x128xf32>,
    return
  }
  func.func @transform_0(%arg0: i32, %arg1: i32) -> (i32, i32) {
    %c2_i32 = arith.constant 2 : i32
    %0 = arith.muli %arg0, %c2_i32 : i32
    %1 = arith.addi %0, %arg1 : i32
    %c0_i32 = arith.constant 0 : i32
    %c0_i32_0 = arith.constant 0 : i32
    return %1, %c0_i32 : i32, i32
  }
  func.func @transform_1(%arg0: i32, %arg1: i32) -> (i32, i32) {
    %c2_i32 = arith.constant 2 : i32
    %0 = arith.muli %arg0, %c2_i32 : i32
    %1 = arith.addi %0, %arg1 : i32
    %c0_i32 = arith.constant 0 : i32
    %c0_i32_0 = arith.constant 0 : i32
    return %1, %c0_i32 : i32, i32
  }
  func.func @transform_2(%arg0: i32, %arg1: i32) -> (i32, i32, i32) {
    %c0_i32 = arith.constant 0 : i32
    %c0_i32_0 = arith.constant 0 : i32
    %c0_i32_1 = arith.constant 0 : i32
    return %arg0, %c0_i32, %c0_i32_0 : i32, i32, i32
  }
}

</mosaic_0001>

<llo_original>
// kernel: bbce_with_logit_loss.1
$region0: #{bbce_with_logit_loss.1}
  #allocation0 [shape = 'u32[]', space=smem, size = 0x4, offset = 0x4, fixed_abs, tag = 'smem constant byte address 0x4 - core index']
  #allocation1 [shape = 'u32[144,128]{1,0:T(1,128)}', space=vmem, size = 0x12000, scoped, tag = 'internal scratch']
  %s0 = inlined_call_operand.vmem [shape: f32[16,128], index: 0, kind: input, shape index: {}]
  %s1 = inlined_call_operand.vmem [shape: f32[16,128], index: 1, kind: input, shape index: {}]
  %s2 = inlined_call_operand.vmem [shape: f32[1,3,128], index: 2, kind: output, shape index: {}]
  %s3 = sld [smem:[#allocation0]]
  $region45: #{bbce_with_logit_loss.1} parent=0
    _
  %s5 = ssub.s32 1, %s3
  %s6 = scalar_select 0, %s5, %s3
  loop: start=0, step=1, limit=4
  $region2: #{bbce_with_logit_loss.1} parent=0 // loop_pre_header
    _
  $region3: #{bbce_with_logit_loss.1} parent=0 // loop_header
    %s8 = sphi 0, %s12
    %p9 = scmp.ge.s32.totalorder %s8, 4
    %s15 = sphi 0, %s27
    %s16 = sphi 0, %s23
    %s17 = sphi 0, %s15
    %s18 = sphi 0, %s16
    %s19 = sphi 0, %s17
    %s20 = sphi 0, %s18
    %s34 = sphi 0, %s36
    %s37 = sphi 0, %s34
    %s38 = sphi 0, %s37
    %s54 = sphi 0, %s38
    %s64 = sphi 0, %s66
    %s67 = sphi 0, %s64
    %s68 = sphi 0, %s67
    %s84 = sphi 0, %s68
    %s90 = sphi 0, %s92
    %s93 = sphi 0, %s90
    %s94 = sphi 0, %s93
    %s110 = sphi 0, %s94
  $region4: #{bbce_with_logit_loss.1} parent=0 // loop_header_branch
    %11 = sbr.rel (%p9) target = $region8
  $region5: #{bbce_with_logit_loss.1} parent=0 // loop_body
    %s13 = ssub.s32 %s8, 1
    %s14 = ssub.s32 %s8, 2
    %s21 = sadd.s32 1, %s16
    %p22 = scmp.ge.s32.totalorder %s21, 2
    %s23 = scalar_select %p22, 0, %s21
    %s24 = sadd.s32 1, %s15
    %s25 = scalar_select %p22, %s24, %s15
    %p26 = scmp.ge.s32.totalorder %s25, 1
    %s27 = scalar_select %p26, 0, %s25
    %s28 = smul.u32 %s15, 2
    %s29 = sadd.s32 %s28, %s16
    %s30 = smul.u32 %s27, 2
    %s31 = sadd.s32 %s30, %s23
    %s32 = ssub.s32 %s29, %s31
    %p33 = scmp.eq.s32.totalorder %s32, 0
    %s35 = sadd.s32 %s34, 1
    %s36 = scalar_select %p33, %s34, %s35
    %p39 = pneg %p33
    %p40 = scmp.eq.s32.totalorder %s8, 1
    %p41 = por %p39, %p40
    %p42 = scmp.ne.s32.totalorder %s34, %s37
    %p43 = scmp.eq.s32.totalorder %s8, 0
    %p44 = por %p42, %p43
    %p45 = scmp.ne.s32.totalorder %s34, %s37
    %p46 = scmp.eq.s32.totalorder %s13, 1
    %p47 = por %p45, %p46
    %p48 = scmp.ne.s32.totalorder %s37, %s38
    %p49 = scmp.eq.s32.totalorder %s13, 0
    %p50 = por %p48, %p49
    %p51 = scmp.ne.s32.totalorder %s37, %s38
    %p52 = scmp.eq.s32.totalorder %s14, 1
    %p53 = por %p51, %p52
    %p55 = scmp.ne.s32.totalorder %s38, %s54
    %p56 = scmp.eq.s32.totalorder %s14, 0
    %p57 = por %p55, %p56
    %s58 = smul.u32 %s15, 2
    %s59 = sadd.s32 %s58, %s16
    %s60 = smul.u32 %s27, 2
    %s61 = sadd.s32 %s60, %s23
    %s62 = ssub.s32 %s59, %s61
    %p63 = scmp.eq.s32.totalorder %s62, 0
    %s65 = sadd.s32 %s64, 1
    %s66 = scalar_select %p63, %s64, %s65
    %p69 = pneg %p63
    %p70 = scmp.eq.s32.totalorder %s8, 1
    %p71 = por %p69, %p70
    %p72 = scmp.ne.s32.totalorder %s64, %s67
    %p73 = scmp.eq.s32.totalorder %s8, 0
    %p74 = por %p72, %p73
    %p75 = scmp.ne.s32.totalorder %s64, %s67
    %p76 = scmp.eq.s32.totalorder %s13, 1
    %p77 = por %p75, %p76
    %p78 = scmp.ne.s32.totalorder %s67, %s68
    %p79 = scmp.eq.s32.totalorder %s13, 0
    %p80 = por %p78, %p79
    %p81 = scmp.ne.s32.totalorder %s67, %s68
    %p82 = scmp.eq.s32.totalorder %s14, 1
    %p83 = por %p81, %p82
    %p85 = scmp.ne.s32.totalorder %s68, %s84
    %p86 = scmp.eq.s32.totalorder %s14, 0
    %p87 = por %p85, %p86
    %s88 = ssub.s32 %s15, %s27
    %p89 = scmp.eq.s32.totalorder %s88, 0
    %s91 = sadd.s32 %s90, 1
    %s92 = scalar_select %p89, %s90, %s91
    %p95 = pneg %p89
    %p96 = scmp.eq.s32.totalorder %s8, 1
    %p97 = por %p95, %p96
    %p98 = scmp.ne.s32.totalorder %s90, %s93
    %p99 = scmp.eq.s32.totalorder %s8, 0
    %p100 = por %p98, %p99
    %p101 = scmp.ne.s32.totalorder %s90, %s93
    %p102 = scmp.eq.s32.totalorder %s13, 1
    %p103 = por %p101, %p102
    %p104 = scmp.ne.s32.totalorder %s93, %s94
    %p105 = scmp.eq.s32.totalorder %s13, 0
    %p106 = por %p104, %p105
    %p107 = scmp.ne.s32.totalorder %s93, %s94
    %p108 = scmp.eq.s32.totalorder %s14, 1
    %p109 = por %p107, %p108
    %p111 = scmp.ne.s32.totalorder %s94, %s110
    %p112 = scmp.eq.s32.totalorder %s14, 0
    %p113 = por %p111, %p112
    %p114 = scmp.le.s32.totalorder 1, %s8
    %p115 = scmp.lt.s32.totalorder %s8, 3
    %p116 = pnand %p114, %p115
    %p117 = pneg %p116
    // Predicated region
    $region9: #{bbce_with_logit_loss.1} parent=5 // pred_check
      _
    $region10: #{bbce_with_logit_loss.1} parent=5 // pred_check_branch
      %119 = sbr.rel (%p116) target = $region12
    $region11: #{bbce_with_logit_loss.1} parent=5 // pred_region
      %s120 = ssub.s32 %s8, 1
    $region12: #{bbce_with_logit_loss.1} parent=5 // pred_fallthru
      _
    %p121 = scmp.lt.s32.totalorder %s8, 2
    // Predicated region
    $region13: #{bbce_with_logit_loss.1} parent=5 // pred_check
      %p122 = pneg %p121
    $region14: #{bbce_with_logit_loss.1} parent=5 // pred_check_branch
      %124 = sbr.rel (%p122) target = $region16
    $region15: #{bbce_with_logit_loss.1} parent=5 // pred_region
      // Predicated region
      $region17: #{bbce_with_logit_loss.1} parent=15 // pred_check
        %p125 = pneg %p44
      $region18: #{bbce_with_logit_loss.1} parent=15 // pred_check_branch
        %127 = sbr.rel (%p125) target = $region20
      $region19: #{bbce_with_logit_loss.1} parent=15 // pred_region
        %s128 = smul.u32 %s15, 2
        %s129 = sadd.s32 %s128, %s16
        %p130 = scmp.lt.s32.totalorder %s129, 1
        %s131 = scalar_select %p130, %s129, 1
        %s132 = smul.addr %s131, 8
        %s133 = scalar_lea.vmem %s0, %s132
        %s134 = smul.u32 %s15, 2
        %s135 = sadd.s32 %s134, %s16
      $region20: #{bbce_with_logit_loss.1} parent=15 // pred_fallthru
        _
      // Predicated region
      $region21: #{bbce_with_logit_loss.1} parent=15 // pred_check
        %p136 = pneg %p74
      $region22: #{bbce_with_logit_loss.1} parent=15 // pred_check_branch
        %138 = sbr.rel (%p136) target = $region24
      $region23: #{bbce_with_logit_loss.1} parent=15 // pred_region
        %s139 = smul.u32 %s15, 2
        %s140 = sadd.s32 %s139, %s16
        %p141 = scmp.lt.s32.totalorder %s140, 1
        %s142 = scalar_select %p141, %s140, 1
        %s143 = smul.addr %s142, 8
        %s144 = scalar_lea.vmem %s1, %s143
        %s145 = smul.u32 %s15, 2
        %s146 = sadd.s32 %s145, %s16
      $region24: #{bbce_with_logit_loss.1} parent=15 // pred_fallthru
        _
    $region16: #{bbce_with_logit_loss.1} parent=5 // pred_fallthru
      _
    %p147 = scmp.le.s32.totalorder 1, %s8
    %p148 = scmp.lt.s32.totalorder %s8, 3
    %p149 = pnand %p147, %p148
    %p150 = pneg %p149
    // Predicated region
    $region25: #{bbce_with_logit_loss.1} parent=5 // pred_check
      _
    $region26: #{bbce_with_logit_loss.1} parent=5 // pred_check_branch
      %152 = sbr.rel (%p149) target = $region28
    $region27: #{bbce_with_logit_loss.1} parent=5 // pred_region
      %s153 = ssub.s32 %s8, 1
      %s154 = smul.u32 %s17, 2
      %s155 = sadd.s32 %s154, %s18
      %p156 = scmp.lt.s32.totalorder %s155, 1
      %s157 = scalar_select %p156, %s155, 1
      %s158 = smul.addr %s157, 8
      %s159 = scalar_lea.vmem %s0, %s158
      %p160 = pneg %p50
      %p161 = pneg %p47
      %s162 = smul.u32 %s17, 2
      %s163 = sadd.s32 %s162, %s18
      %p164 = scmp.lt.s32.totalorder %s163, 1
      %s165 = scalar_select %p164, %s163, 1
      %s166 = smul.addr %s165, 8
      %s167 = scalar_lea.vmem %s1, %s166
      %p168 = pneg %p80
      %p169 = pneg %p77
      %p170 = pneg %p106
      %p171 = pneg %p103
      %p172 = scmp.lt.s32.totalorder %s17, 0
      %s173 = scalar_select %p172, %s17, 0
      %s174 = smul.addr %s173, 4
      %s175 = scalar_lea.vmem %s2, %s174
      %s176 = smul.u32 %s17, 2
      %s177 = sadd.s32 %s176, %s18
      %p178 = scmp.lt.s32.totalorder %s177, 1
      %s179 = scalar_select %p178, %s177, 1
      %s180 = smul.addr %s179, 8
      %s181 = scalar_lea.vmem %s0, %s180
      %s182 = smul.u32 %s17, 2
      %s183 = sadd.s32 %s182, %s18
      %s184 = smul.u32 %s17, 2
      %s185 = sadd.s32 %s184, %s18
      %p186 = scmp.lt.s32.totalorder %s185, 1
      %s187 = scalar_select %p186, %s185, 1
      %s188 = smul.addr %s187, 8
      %s189 = scalar_lea.vmem %s1, %s188
      %s190 = smul.u32 %s17, 2
      %s191 = sadd.s32 %s190, %s18
      %p192 = scmp.lt.s32.totalorder %s17, 0
      %s193 = scalar_select %p192, %s17, 0
      %s194 = smul.addr %s193, 4
      %s195 = scalar_lea.vmem %s2, %s194
      %p196 = scmp.eq.s32.totalorder %s18, 0
      // Predicated region
      $region29: #{bbce_with_logit_loss.1} parent=27 // pred_check
        %p197 = pneg %p196
      $region30: #{bbce_with_logit_loss.1} parent=27 // pred_check_branch
        %199 = sbr.rel (%p197) target = $region32
      $region31: #{bbce_with_logit_loss.1} parent=27 // pred_region
        %200 = vst [vmem:[%s195] sm:$0x7] 0.0
      $region32: #{bbce_with_logit_loss.1} parent=27 // pred_fallthru
        _
      %v201 = vld [vmem:[%s181] sm:$0xff]
      %v202 = vld [vmem:[%s189] sm:$0xff]
      %v203 = vsub.f32 0.0, %v201
      %v204 = vmax.f32 %v203, 0.0
      %v205 = vand.u32 2147483647, %v201
      %v206 = vsub.f32 0.0, %v205
      %v207 = vmul.f32 %v206, 1.442695
      %v208 = vpow.pop %v207
      %v209 = vadd.f32 %v208, 1.0
      %v210 = vlog2.pop %v209
      %v211 = vmul.f32 %v210, 0.6931472
      %v212 = vmul.f32 -0.5, %v208
      %v213 = vadd.f32 %v212, 1.0
      %v214 = vmul.f32 %v213, %v208
      %v215 = vand.u32 2147483647, %v208
      %vm216 = vcmp.lt.f32.partialorder %v215, 0.0004427343
      %v217 = vsel %vm216, %v214, %v211
      %v218 = vadd.f32 %v204, %v217
      %v219 = vsub.f32 1.0, %v202
      %v220 = vmul.f32 %v219, %v201
      %v221 = vadd.f32 %v220, %v218
      %v222 = vmul.f32 %v202, %v218
      %v223 = vld [vmem:[%s195] sm:$0x1]
      %v224 = vrot.slane %v202, 4
      %v225 = vadd.f32 %v202, %v224
      %v226 = vrot.slane %v225, 2
      %v227 = vadd.f32 %v225, %v226
      %v228 = vrot.slane %v227, 1
      %v229 = vadd.f32 %v227, %v228
      %v230 = vadd.f32 %v223, %v229
      %231 = vst [vmem:[%s195] sm:$0x1] %v230
      %v232 = vld [vmem:[%s195 + $0x1] sm:$0x1]
      %v233 = vrot.slane %v221, 4
      %v234 = vadd.f32 %v221, %v233
      %v235 = vrot.slane %v234, 2
      %v236 = vadd.f32 %v234, %v235
      %v237 = vrot.slane %v236, 1
      %v238 = vadd.f32 %v236, %v237
      %v239 = vadd.f32 %v232, %v238
      %240 = vst [vmem:[%s195 + $0x1] sm:$0x1] %v239
      %v241 = vld [vmem:[%s195 + $0x2] sm:$0x1]
      %v242 = vrot.slane %v222, 4
      %v243 = vadd.f32 %v222, %v242
      %v244 = vrot.slane %v243, 2
      %v245 = vadd.f32 %v243, %v244
      %v246 = vrot.slane %v245, 1
      %v247 = vadd.f32 %v245, %v246
      %v248 = vadd.f32 %v241, %v247
      %249 = vst [vmem:[%s195 + $0x2] sm:$0x1] %v248
      %p250 = scmp.lt.s32.totalorder %s17, 0
      %s251 = scalar_select %p250, %s17, 0
      %s252 = smul.addr %s251, 4
      %s253 = scalar_lea.vmem %s2, %s252
      // Predicated region
      $region33: #{bbce_with_logit_loss.1} parent=27 // pred_check
        %p254 = pneg %p103
      $region34: #{bbce_with_logit_loss.1} parent=27 // pred_check_branch
        %256 = sbr.rel (%p254) target = $region36
      $region35: #{bbce_with_logit_loss.1} parent=27 // pred_region
        _
      $region36: #{bbce_with_logit_loss.1} parent=27 // pred_fallthru
        _
      // Predicated region
      $region37: #{bbce_with_logit_loss.1} parent=27 // pred_check
        %p257 = pneg %p103
      $region38: #{bbce_with_logit_loss.1} parent=27 // pred_check_branch
        %259 = sbr.rel (%p257) target = $region40
      $region39: #{bbce_with_logit_loss.1} parent=27 // pred_region
        %p260 = scmp.lt.s32.totalorder %s17, 0
        %s261 = scalar_select %p260, %s17, 0
        %s262 = smul.addr %s261, 4
        %s263 = scalar_lea.vmem %s2, %s262
      $region40: #{bbce_with_logit_loss.1} parent=27 // pred_fallthru
        _
    $region28: #{bbce_with_logit_loss.1} parent=5 // pred_fallthru
      _
    %p264 = scmp.le.s32.totalorder 2, %s8
    // Predicated region
    $region41: #{bbce_with_logit_loss.1} parent=5 // pred_check
      %p265 = pneg %p264
    $region42: #{bbce_with_logit_loss.1} parent=5 // pred_check_branch
      %267 = sbr.rel (%p265) target = $region44
    $region43: #{bbce_with_logit_loss.1} parent=5 // pred_region
      %s268 = ssub.s32 %s8, 2
    $region44: #{bbce_with_logit_loss.1} parent=5 // pred_fallthru
      _
  $region6: #{bbce_with_logit_loss.1} parent=0 // loop_footer
    %s12 = sadd.s32 1, %s8
  $region7: #{bbce_with_logit_loss.1} parent=0 // loop_footer_branch
    %7 = sbr.rel target = $region3
  $region8: #{bbce_with_logit_loss.1} parent=0 // loop_exit
    _

</llo_original>
